<compile_context>
chip_gen: v5e
topology: v5e:2x2
jax: 0.10.0
libtpu: 0.0.40
codegen_flags: <defaults>
</compile_context>

<pallas_src>
import math

import jax
import jax.numpy as jnp
from jax.experimental import pallas as pl
from jax.experimental.pallas import tpu as pltpu

IMG_C, IMG_H, IMG_W = 3, 16, 16
FEAT_C = 32
NUM_ANCHORS = 3
ANCHOR_SIZES = (4.0, 8.0, 12.0)
POOL = 4
HIDDEN = 64
NUM_CLASSES = 5
TOPK = 8
HEAD_PAD = 128                       # lane-dense padded width for fused head outputs
BBOX_XFORM_CLIP = math.log(1000.0 / 16.0)

_IMG_MEAN = jnp.array([0.485, 0.456, 0.406], jnp.float32)
_IMG_INVSTD = 1.0 / jnp.array([0.229, 0.224, 0.225], jnp.float32)

_VMEM = pl.BlockSpec(memory_space=pltpu.MemorySpace.VMEM)


# ----------------------------- Pallas kernels -----------------------------

def _backbone_kernel(x_ref, w_ref, b_ref, o_ref):
    # Backbone conv3x3 (im2col matmul, normalization scale pre-folded) + ReLU.
    o_ref[...] = jnp.maximum(
        jnp.dot(x_ref[...], w_ref[...], preferred_element_type=jnp.float32)
        + b_ref[...], 0.0)


def backbone_conv(patches, w, b):
    # patches: (M, 9*IMG_C), w: (9*IMG_C, FEAT_C), b: (1, FEAT_C)
    M = patches.shape[0]
    return pl.pallas_call(
        _backbone_kernel,
        out_shape=jax.ShapeDtypeStruct((M, FEAT_C), jnp.float32),
        in_specs=[_VMEM, _VMEM, _VMEM],
        out_specs=_VMEM,
    )(patches, w, b)


def _rpn_kernel(p_ref, wc_ref, bc_ref, wh_ref, bh_ref, o_ref):
    # Fused RPN: trunk conv3x3 (im2col matmul) + ReLU, then both 1x1 heads
    # (objectness | box deltas) as one padded 128-lane matmul.
    h = jnp.maximum(
        jnp.dot(p_ref[...], wc_ref[...], preferred_element_type=jnp.float32)
        + bc_ref[...], 0.0)
    o_ref[...] = (jnp.dot(h, wh_ref[...], preferred_element_type=jnp.float32)
                  + bh_ref[...])


def rpn_forward(patches, wc, bc, wh, bh):
    # patches: (M, 9*FEAT_C) -> out: (M, HEAD_PAD)
    M = patches.shape[0]
    return pl.pallas_call(
        _rpn_kernel,
        out_shape=jax.ShapeDtypeStruct((M, HEAD_PAD), jnp.float32),
        in_specs=[_VMEM] * 5,
        out_specs=_VMEM,
    )(patches, wc, bc, wh, bh)


def _box_head_kernel(x_ref, w1_ref, b1_ref, w2_ref, b2_ref, w3_ref, b3_ref, o_ref):
    # ROI heads: TwoMLPHead (fc -> relu -> fc -> relu) + FastRCNNPredictor,
    # cls|reg fused into one padded 128-lane output.
    h = jnp.maximum(
        jnp.dot(x_ref[...], w1_ref[...], preferred_element_type=jnp.float32)
        + b1_ref[...], 0.0)
    h = jnp.maximum(
        jnp.dot(h, w2_ref[...], preferred_element_type=jnp.float32)
        + b2_ref[...], 0.0)
    o_ref[...] = (jnp.dot(h, w3_ref[...], preferred_element_type=jnp.float32)
                  + b3_ref[...])


def box_head_forward(pooled, w1, b1, w2, b2, w3, b3):
    # pooled: (R, POOL*POOL*FEAT_C) -> out: (R, HEAD_PAD), R = N*TOPK (all images batched)
    R = pooled.shape[0]
    return pl.pallas_call(
        _box_head_kernel,
        out_shape=jax.ShapeDtypeStruct((R, HEAD_PAD), jnp.float32),
        in_specs=[_VMEM] * 7,
        out_specs=_VMEM,
    )(pooled, w1, b1, w2, b2, w3, b3)


# ------------------------------ JAX glue -----------------------------------

def _im2col_3x3(x_nhwc):
    # Zero-padded 3x3 im2col: (N, H, W, C) -> (N*H*W, 9*C).  Pure XLA; fuses
    # with the surrounding elementwise prep.
    N, H, W, C = x_nhwc.shape
    xp = jnp.pad(x_nhwc, ((0, 0), (1, 1), (1, 1), (0, 0)))
    taps = [xp[:, kh:kh + H, kw:kw + W, :] for kh in range(3) for kw in range(3)]
    patches = jnp.concatenate(taps, axis=-1)           # (N, H, W, 9*C)
    return patches.reshape(N * H * W, 9 * C)


def _make_anchors(H, W):
    ys, xs = jnp.meshgrid(jnp.arange(H, dtype=jnp.float32) + 0.5,
                          jnp.arange(W, dtype=jnp.float32) + 0.5, indexing="ij")
    centers = jnp.stack([xs, ys], axis=-1).reshape(-1, 1, 2)        # (H*W, 1, 2)
    sizes = jnp.array(ANCHOR_SIZES, jnp.float32).reshape(1, -1, 1)  # (1, A, 1)
    cx = centers[..., 0:1]
    cy = centers[..., 1:2]
    x1 = cx - sizes / 2
    y1 = cy - sizes / 2
    x2 = cx + sizes / 2
    y2 = cy + sizes / 2
    return jnp.concatenate([x1, y1, x2, y2], axis=-1).reshape(-1, 4)  # (H*W*A, 4)


def _decode_boxes(anchors, deltas):
    wa = anchors[:, 2] - anchors[:, 0]
    ha = anchors[:, 3] - anchors[:, 1]
    cxa = anchors[:, 0] + 0.5 * wa
    cya = anchors[:, 1] + 0.5 * ha
    dx, dy = deltas[:, 0], deltas[:, 1]
    dw = jnp.minimum(deltas[:, 2], BBOX_XFORM_CLIP)   # torchvision-style clamp
    dh = jnp.minimum(deltas[:, 3], BBOX_XFORM_CLIP)
    cx = cxa + dx * wa
    cy = cya + dy * ha
    w = wa * jnp.exp(dw)
    h = ha * jnp.exp(dh)
    return jnp.stack([cx - w / 2, cy - h / 2, cx + w / 2, cy + h / 2], axis=-1)


def _clip_boxes(boxes, size_hw):
    h, w = size_hw
    return jnp.stack([jnp.clip(boxes[:, 0], 0.0, w), jnp.clip(boxes[:, 1], 0.0, h),
                      jnp.clip(boxes[:, 2], 0.0, w), jnp.clip(boxes[:, 3], 0.0, h)], axis=-1)


def _roi_pool(feat_hwc, boxes):
    # TODO(synk): torchvision RoIAlign (bilinear sampling) + NMS proposal
    # filtering is a data-dependent gather with no clean BlockSpec mapping;
    # a nearest-neighbor grid gather stays in plain JAX here.
    H, W, C = feat_hwc.shape
    grid = (jnp.arange(POOL, dtype=jnp.float32) + 0.5) / POOL
    ys = boxes[:, 1:2] + (boxes[:, 3:4] - boxes[:, 1:2]) * grid[None, :]
    xs = boxes[:, 0:1] + (boxes[:, 2:3] - boxes[:, 0:1]) * grid[None, :]
    yi = jnp.clip(jnp.floor(ys), 0, H - 1).astype(jnp.int32)
    xi = jnp.clip(jnp.floor(xs), 0, W - 1).astype(jnp.int32)
    pooled = feat_hwc[yi[:, :, None], xi[:, None, :], :]  # (R, POOL, POOL, C)
    return pooled.reshape(boxes.shape[0], POOL * POOL * C)


# ----------------------------- Model wrapper --------------------------------

class GeneralizedRCNN:
    """Pallas re-implementation of GeneralizedRCNN forward (inference path)."""

    def __init__(self, params, multiframe=False):
        self.params = params
        self.multiframe = multiframe
        self.training = False
        self._has_warned = False
        self._prep = self._prepare(params)

    @staticmethod
    def _prepare(p):
        # Fold transform 1/std into the backbone conv weight (exact), reshape
        # conv weights for im2col matmuls, and fuse + 128-lane-pad the narrow
        # RPN / predictor head weights so kernel stores are unmasked.
        wb = (p["backbone_w"] * _IMG_INVSTD[None, None, :, None]).reshape(9 * IMG_C, FEAT_C)
        bb = p["backbone_b"].reshape(1, FEAT_C)
        wr = p["rpn_conv_w"].reshape(9 * FEAT_C, FEAT_C)
        br = p["rpn_conv_b"].reshape(1, FEAT_C)

        wh = jnp.zeros((FEAT_C, HEAD_PAD), jnp.float32)
        wh = wh.at[:, :NUM_ANCHORS].set(p["rpn_obj_w"])
        wh = wh.at[:, NUM_ANCHORS:NUM_ANCHORS + 4 * NUM_ANCHORS].set(p["rpn_box_w"])
        bh = jnp.zeros((1, HEAD_PAD), jnp.float32)
        bh = bh.at[:, :NUM_ANCHORS].set(p["rpn_obj_b"])
        bh = bh.at[:, NUM_ANCHORS:NUM_ANCHORS + 4 * NUM_ANCHORS].set(p["rpn_box_b"])

        wp = jnp.zeros((HIDDEN, HEAD_PAD), jnp.float32)
        wp = wp.at[:, :NUM_CLASSES].set(p["cls_w"])
        wp = wp.at[:, NUM_CLASSES:NUM_CLASSES + 4 * NUM_CLASSES].set(p["reg_w"])
        bp = jnp.zeros((1, HEAD_PAD), jnp.float32)
        bp = bp.at[:, :NUM_CLASSES].set(p["cls_b"])
        bp = bp.at[:, NUM_CLASSES:NUM_CLASSES + 4 * NUM_CLASSES].set(p["reg_b"])

        return {"wb": wb, "bb": bb, "wr": wr, "br": br, "wh": wh, "bh": bh,
                "w1": p["fc1_w"], "b1": p["fc1_b"],
                "w2": p["fc2_w"], "b2": p["fc2_b"],
                "wp": wp, "bp": bp}

    def forward(self, images, targets=None):
        if self.training and targets is None:
            raise ValueError("In training mode, targets should be passed")
        # TODO(synk): training / multiframe branches (target transforms, per-frame
        # feature averaging, loss heads) and log-file timing writes are not
        # reproduced; only the inference data path is implemented.
        original_image_sizes = []
        for img in images:
            h, w = img.shape[-2:]
            original_image_sizes.append((int(h), int(w)))
        image_sizes = [(int(img.shape[-2]), int(img.shape[-1])) for img in images]
        pr = self._prep

        # ---- transform: batch + normalize (mean fused into XLA prep, 1/std folded
        # into the backbone weight -> no standalone Pallas normalize kernel) ----
        batch = jnp.stack(images, axis=0)                                # (N, C, H, W)
        batch = jnp.transpose(batch, (0, 2, 3, 1)).astype(jnp.float32)   # NHWC
        batch = batch - _IMG_MEAN                                        # fuses into im2col prep
        N, H, W = batch.shape[0], batch.shape[1], batch.shape[2]

        # ---- backbone: im2col + single Pallas MXU matmul (conv3x3 + ReLU) ----
        patches0 = _im2col_3x3(batch)                                    # (N*H*W, 27)
        feat_flat = backbone_conv(patches0, pr["wb"], pr["bb"])          # (N*H*W, FEAT_C)
        features = feat_flat.reshape(N, H, W, FEAT_C)

        # ---- RPN: fused trunk conv + both 1x1 heads in ONE Pallas call ----
        patches1 = _im2col_3x3(features)                                 # (N*H*W, 288)
        head_out = rpn_forward(patches1, pr["wr"], pr["br"], pr["wh"], pr["bh"])
        obj = head_out[:, :NUM_ANCHORS].reshape(N, H * W * NUM_ANCHORS)
        deltas = head_out[:, NUM_ANCHORS:NUM_ANCHORS + 4 * NUM_ANCHORS]
        deltas = deltas.reshape(N, H * W * NUM_ANCHORS, 4)

        anchors = _make_anchors(H, W)
        proposals = []
        for i in range(N):
            boxes_i = _decode_boxes(anchors, deltas[i])
            boxes_i = _clip_boxes(boxes_i, image_sizes[i])
            _, top_idx = jax.lax.top_k(obj[i], TOPK)
            proposals.append(boxes_i[top_idx])
        proposal_losses = {}

        # ---- roi_heads: batched ROI pool (JAX gather) + ONE fused MLP-head call ----
        pooled = jnp.concatenate(
            [_roi_pool(features[i], proposals[i]) for i in range(N)], axis=0)  # (N*TOPK, 512)
        pred = box_head_forward(pooled, pr["w1"], pr["b1"], pr["w2"], pr["b2"],
                                pr["wp"], pr["bp"])                       # (N*TOPK, HEAD_PAD)
        cls_all = pred[:, :NUM_CLASSES]
        reg_all = pred[:, NUM_CLASSES:NUM_CLASSES + 4 * NUM_CLASSES]

        detections = []
        for i in range(N):
            cls_logits = cls_all[i * TOPK:(i + 1) * TOPK]
            box_reg = reg_all[i * TOPK:(i + 1) * TOPK]
            probs = jax.nn.softmax(cls_logits, axis=-1)
            labels = jnp.argmax(probs[:, 1:], axis=-1) + 1          # skip background
            scores = jnp.take_along_axis(probs, labels[:, None], axis=-1)[:, 0]
            reg = box_reg.reshape(TOPK, NUM_CLASSES, 4)
            sel = jnp.take_along_axis(reg, labels[:, None, None], axis=1)[:, 0, :]
            final_boxes = _decode_boxes(proposals[i], sel)
            final_boxes = _clip_boxes(final_boxes, image_sizes[i])
            detections.append({"boxes": final_boxes, "labels": labels, "scores": scores})
        detector_losses = {}

        # ---- transform.postprocess: rescale boxes to the original image sizes ----
        post = []
        for i, det in enumerate(detections):
            rh = original_image_sizes[i][0] / image_sizes[i][0]
            rw = original_image_sizes[i][1] / image_sizes[i][1]
            scale = jnp.array([rw, rh, rw, rh], jnp.float32)
            det = dict(det)
            det["boxes"] = det["boxes"] * scale
            post.append(det)
        detections = post

        losses = {}
        losses.update(detector_losses)
        losses.update(proposal_losses)
        return losses, detections


def init_params(key):
    ks = jax.random.split(key, 8)

    def w(k, shape, scale=0.1):
        return scale * jax.random.normal(k, shape, jnp.float32)

    return {
        "backbone_w": w(ks[0], (3, 3, IMG_C, FEAT_C)),
        "backbone_b": jnp.zeros((1, 1, FEAT_C), jnp.float32),
        "rpn_conv_w": w(ks[1], (3, 3, FEAT_C, FEAT_C)),
        "rpn_conv_b": jnp.zeros((1, 1, FEAT_C), jnp.float32),
        "rpn_obj_w": w(ks[2], (FEAT_C, NUM_ANCHORS)),
        "rpn_obj_b": jnp.zeros((1, NUM_ANCHORS), jnp.float32),
        "rpn_box_w": w(ks[3], (FEAT_C, 4 * NUM_ANCHORS)),
        "rpn_box_b": jnp.zeros((1, 4 * NUM_ANCHORS), jnp.float32),
        "fc1_w": w(ks[4], (POOL * POOL * FEAT_C, HIDDEN)),
        "fc1_b": jnp.zeros((1, HIDDEN), jnp.float32),
        "fc2_w": w(ks[5], (HIDDEN, HIDDEN)),
        "fc2_b": jnp.zeros((1, HIDDEN), jnp.float32),
        "cls_w": w(ks[6], (HIDDEN, NUM_CLASSES)),
        "cls_b": jnp.zeros((1, NUM_CLASSES), jnp.float32),
        "reg_w": w(ks[7], (HIDDEN, NUM_CLASSES * 4)),
        "reg_b": jnp.zeros((1, NUM_CLASSES * 4), jnp.float32),
    }


if __name__ == "__main__":
    key = jax.random.PRNGKey(0)
    pkey, ikey = jax.random.split(key)
    params = init_params(pkey)
    model = GeneralizedRCNN(params, multiframe=False)

    # images: list of CHW float tensors (PyTorch convention), batch of 2.
    imgs = jax.random.uniform(ikey, (2, IMG_C, IMG_H, IMG_W), jnp.float32)
    images = [imgs[0], imgs[1]]

    losses, detections = model.forward(images)
    for leaf in jax.tree_util.tree_leaves((losses, detections)):
        jax.block_until_ready(leaf)
    print("KERNEL_OK")
</pallas_src>

<mosaic_0001>
module attributes {stable_mosaic.version = 11 : i64} {
  func.func @_backbone_kernel(%arg0: memref<512x27xf32, #tpu.memory_space<vmem>>, %arg1: memref<27x32xf32, #tpu.memory_space<vmem>>, %arg2: memref<1x32xf32, #tpu.memory_space<vmem>>, %arg3: memref<512x32xf32, #tpu.memory_space<vmem>>) attributes {dimension_semantics = [], scalar_prefetch = 0 : i64, scratch_operands = 0 : i64, tpu.core_type = #tpu.core_type<tc>} {
    %c0 = arith.constant 0 : index
    %c0_0 = arith.constant 0 : index
    %0 = vector.load %arg0[%c0, %c0_0] : memref<512x27xf32, #tpu.memory_space<vmem>>, vector<512x27xf32>
    %c0_1 = arith.constant 0 : index
    %c0_2 = arith.constant 0 : index
    %1 = vector.load %arg1[%c0_1, %c0_2] : memref<27x32xf32, #tpu.memory_space<vmem>>, vector<27x32xf32>
    %cst = arith.constant dense<0.000000e+00> : vector<512x32xf32>
    %2 = tpu.matmul %0, %1, %cst {dimension_numbers = #tpu.dot_dimension_numbers<[1], [0], [0], [1], [0, 0, 1, 1], [], []>} : vector<512x27xf32>, vector<27x32xf32>, vector<512x32xf32> -> vector<512x32xf32>
    %c0_3 = arith.constant 0 : index
    %c0_4 = arith.constant 0 : index
    %3 = vector.load %arg2[%c0_3, %c0_4] : memref<1x32xf32, #tpu.memory_space<vmem>>, vector<1x32xf32>
    %4 = vector.broadcast %3 : vector<1x32xf32> to vector<512x32xf32>
    %5 = arith.addf %2, %4 : vector<512x32xf32>
    %cst_5 = arith.constant 0.000000e+00 : f32
    %6 = vector.broadcast %cst_5 : f32 to vector<512x32xf32>
    %7 = arith.maximumf %5, %6 : vector<512x32xf32>
    %c0_6 = arith.constant 0 : index
    %c0_7 = arith.constant 0 : index
    %8 = vector.load %arg3[%c0_6, %c0_7] : memref<512x32xf32, #tpu.memory_space<vmem>>, vector<512x32xf32>
    tpu.vector_store %arg3[%c0_6, %c0_7], %7 {strides = array<i32>} : memref<512x32xf32, #tpu.memory_space<vmem>>, vector<512x32xf32>,
    return
  }
}

</mosaic_0001>

<llo_original>
// kernel: tpu_custom_call.1
$region0: #{tpu_custom_call.1}
  #allocation0 [shape = 'u32[]', space=smem, size = 0x4, offset = 0x4, fixed_abs, tag = 'smem constant byte address 0x4 - core index']
  #allocation1 [shape = 'u32[72,128]{1,0:T(1,128)}', space=vmem, size = 0x9000, scoped, tag = 'internal scratch']
  %s0 = inlined_call_operand.vmem [shape: f32[512,27], index: 0, kind: input, shape index: {}]
  %s1 = inlined_call_operand.vmem [shape: f32[27,32], index: 1, kind: input, shape index: {}]
  %s2 = inlined_call_operand.vmem [shape: f32[1,32], index: 2, kind: input, shape index: {}]
  %s3 = inlined_call_operand.vmem [shape: f32[512,32], index: 3, kind: output, shape index: {}]
  %s4 = sld [smem:[#allocation0]]
  $region22: #{tpu_custom_call.1} parent=0
    _
  %s6 = ssub.s32 1, %s4
  %s7 = scalar_select 0, %s6, %s4
  // Predicated region
  $region2: #{tpu_custom_call.1} parent=0 // pred_check
    _
  $region3: #{tpu_custom_call.1} parent=0 // pred_check_branch
    %9 = sbr.rel (0) target = $region5
  $region4: #{tpu_custom_call.1} parent=0 // pred_region
    _
  $region5: #{tpu_custom_call.1} parent=0 // pred_fallthru
    _
  // Predicated region
  $region6: #{tpu_custom_call.1} parent=0 // pred_check
    _
  $region7: #{tpu_custom_call.1} parent=0 // pred_check_branch
    %11 = sbr.rel (0) target = $region9
  $region8: #{tpu_custom_call.1} parent=0 // pred_region
    _
  $region9: #{tpu_custom_call.1} parent=0 // pred_fallthru
    _
  // Predicated region
  $region10: #{tpu_custom_call.1} parent=0 // pred_check
    _
  $region11: #{tpu_custom_call.1} parent=0 // pred_check_branch
    %13 = sbr.rel (0) target = $region13
  $region12: #{tpu_custom_call.1} parent=0 // pred_region
    _
  $region13: #{tpu_custom_call.1} parent=0 // pred_fallthru
    _
  %v14 = vld [vmem:[%s0] sm:$0xff]
  %v15 = vld [vmem:[%s0 + $0x8] sm:$0xff]
  %v16 = vld [vmem:[%s0 + $0x10] sm:$0xff]
  %v17 = vld [vmem:[%s0 + $0x18] sm:$0xff]
  %v18 = vld [vmem:[%s0 + $0x20] sm:$0xff]
  %v19 = vld [vmem:[%s0 + $0x28] sm:$0xff]
  %v20 = vld [vmem:[%s0 + $0x30] sm:$0xff]
  %v21 = vld [vmem:[%s0 + $0x38] sm:$0xff]
  %v22 = vld [vmem:[%s0 + $0x40] sm:$0xff]
  %v23 = vld [vmem:[%s0 + $0x48] sm:$0xff]
  %v24 = vld [vmem:[%s0 + $0x50] sm:$0xff]
  %v25 = vld [vmem:[%s0 + $0x58] sm:$0xff]
  %v26 = vld [vmem:[%s0 + $0x60] sm:$0xff]
  %v27 = vld [vmem:[%s0 + $0x68] sm:$0xff]
  %v28 = vld [vmem:[%s0 + $0x70] sm:$0xff]
  %v29 = vld [vmem:[%s0 + $0x78] sm:$0xff]
  %v30 = vld [vmem:[%s0 + $0x80] sm:$0xff]
  %v31 = vld [vmem:[%s0 + $0x88] sm:$0xff]
  %v32 = vld [vmem:[%s0 + $0x90] sm:$0xff]
  %v33 = vld [vmem:[%s0 + $0x98] sm:$0xff]
  %v34 = vld [vmem:[%s0 + $0xa0] sm:$0xff]
  %v35 = vld [vmem:[%s0 + $0xa8] sm:$0xff]
  %v36 = vld [vmem:[%s0 + $0xb0] sm:$0xff]
  %v37 = vld [vmem:[%s0 + $0xb8] sm:$0xff]
  %v38 = vld [vmem:[%s0 + $0xc0] sm:$0xff]
  %v39 = vld [vmem:[%s0 + $0xc8] sm:$0xff]
  %v40 = vld [vmem:[%s0 + $0xd0] sm:$0xff]
  %v41 = vld [vmem:[%s0 + $0xd8] sm:$0xff]
  %v42 = vld [vmem:[%s0 + $0xe0] sm:$0xff]
  %v43 = vld [vmem:[%s0 + $0xe8] sm:$0xff]
  %v44 = vld [vmem:[%s0 + $0xf0] sm:$0xff]
  %v45 = vld [vmem:[%s0 + $0xf8] sm:$0xff]
  %v46 = vld [vmem:[%s0 + $0x100] sm:$0xff]
  %v47 = vld [vmem:[%s0 + $0x108] sm:$0xff]
  %v48 = vld [vmem:[%s0 + $0x110] sm:$0xff]
  %v49 = vld [vmem:[%s0 + $0x118] sm:$0xff]
  %v50 = vld [vmem:[%s0 + $0x120] sm:$0xff]
  %v51 = vld [vmem:[%s0 + $0x128] sm:$0xff]
  %v52 = vld [vmem:[%s0 + $0x130] sm:$0xff]
  %v53 = vld [vmem:[%s0 + $0x138] sm:$0xff]
  %v54 = vld [vmem:[%s0 + $0x140] sm:$0xff]
  %v55 = vld [vmem:[%s0 + $0x148] sm:$0xff]
  %v56 = vld [vmem:[%s0 + $0x150] sm:$0xff]
  %v57 = vld [vmem:[%s0 + $0x158] sm:$0xff]
  %v58 = vld [vmem:[%s0 + $0x160] sm:$0xff]
  %v59 = vld [vmem:[%s0 + $0x168] sm:$0xff]
  %v60 = vld [vmem:[%s0 + $0x170] sm:$0xff]
  %v61 = vld [vmem:[%s0 + $0x178] sm:$0xff]
  %v62 = vld [vmem:[%s0 + $0x180] sm:$0xff]
  %v63 = vld [vmem:[%s0 + $0x188] sm:$0xff]
  %v64 = vld [vmem:[%s0 + $0x190] sm:$0xff]
  %v65 = vld [vmem:[%s0 + $0x198] sm:$0xff]
  %v66 = vld [vmem:[%s0 + $0x1a0] sm:$0xff]
  %v67 = vld [vmem:[%s0 + $0x1a8] sm:$0xff]
  %v68 = vld [vmem:[%s0 + $0x1b0] sm:$0xff]
  %v69 = vld [vmem:[%s0 + $0x1b8] sm:$0xff]
  %v70 = vld [vmem:[%s0 + $0x1c0] sm:$0xff]
  %v71 = vld [vmem:[%s0 + $0x1c8] sm:$0xff]
  %v72 = vld [vmem:[%s0 + $0x1d0] sm:$0xff]
  %v73 = vld [vmem:[%s0 + $0x1d8] sm:$0xff]
  %v74 = vld [vmem:[%s0 + $0x1e0] sm:$0xff]
  %v75 = vld [vmem:[%s0 + $0x1e8] sm:$0xff]
  %v76 = vld [vmem:[%s0 + $0x1f0] sm:$0xff]
  %v77 = vld [vmem:[%s0 + $0x1f8] sm:$0xff]
  %v78 = vld [vmem:[%s1] sm:$0xff]
  %v79 = vld [vmem:[%s1 + $0x8] sm:$0xff]
  %v80 = vld [vmem:[%s1 + $0x10] sm:$0xff]
  %v81 = vld [vmem:[%s1 + $0x18] sm:$0x7]
  %v82 = vld [vmem:[%s2] sm:$0x1]
  %v84 = vperm.slane %v82, 0
  %vm86 = vcmask 220160
  %v88 = vsel %vm86, %v14, 0
  %v91 = vsel %vm86, %v15, 0
  %v94 = vsel %vm86, %v16, 0
  %v97 = vsel %vm86, %v17, 0
  %v100 = vsel %vm86, %v18, 0
  %v103 = vsel %vm86, %v19, 0
  %v106 = vsel %vm86, %v20, 0
  %v109 = vsel %vm86, %v21, 0
  %v112 = vsel %vm86, %v22, 0
  %v115 = vsel %vm86, %v23, 0
  %v118 = vsel %vm86, %v24, 0
  %v121 = vsel %vm86, %v25, 0
  %v124 = vsel %vm86, %v26, 0
  %v127 = vsel %vm86, %v27, 0
  %v130 = vsel %vm86, %v28, 0
  %v133 = vsel %vm86, %v29, 0
  %v136 = vsel %vm86, %v30, 0
  %v139 = vsel %vm86, %v31, 0
  %v142 = vsel %vm86, %v32, 0
  %v145 = vsel %vm86, %v33, 0
  %v148 = vsel %vm86, %v34, 0
  %v151 = vsel %vm86, %v35, 0
  %v154 = vsel %vm86, %v36, 0
  %v157 = vsel %vm86, %v37, 0
  %v160 = vsel %vm86, %v38, 0
  %v163 = vsel %vm86, %v39, 0
  %v166 = vsel %vm86, %v40, 0
  %v169 = vsel %vm86, %v41, 0
  %v172 = vsel %vm86, %v42, 0
  %v175 = vsel %vm86, %v43, 0
  %v178 = vsel %vm86, %v44, 0
  %v181 = vsel %vm86, %v45, 0
  %v184 = vsel %vm86, %v46, 0
  %v187 = vsel %vm86, %v47, 0
  %v190 = vsel %vm86, %v48, 0
  %v193 = vsel %vm86, %v49, 0
  %v196 = vsel %vm86, %v50, 0
  %v199 = vsel %vm86, %v51, 0
  %v202 = vsel %vm86, %v52, 0
  %v205 = vsel %vm86, %v53, 0
  %v208 = vsel %vm86, %v54, 0
  %v211 = vsel %vm86, %v55, 0
  %v214 = vsel %vm86, %v56, 0
  %v217 = vsel %vm86, %v57, 0
  %v220 = vsel %vm86, %v58, 0
  %v223 = vsel %vm86, %v59, 0
  %v226 = vsel %vm86, %v60, 0
  %v229 = vsel %vm86, %v61, 0
  %v232 = vsel %vm86, %v62, 0
  %v235 = vsel %vm86, %v63, 0
  %v238 = vsel %vm86, %v64, 0
  %v241 = vsel %vm86, %v65, 0
  %v244 = vsel %vm86, %v66, 0
  %v247 = vsel %vm86, %v67, 0
  %v250 = vsel %vm86, %v68, 0
  %v253 = vsel %vm86, %v69, 0
  %v256 = vsel %vm86, %v70, 0
  %v259 = vsel %vm86, %v71, 0
  %v262 = vsel %vm86, %v72, 0
  %v265 = vsel %vm86, %v73, 0
  %v268 = vsel %vm86, %v74, 0
  %v271 = vsel %vm86, %v75, 0
  %v274 = vsel %vm86, %v76, 0
  %v277 = vsel %vm86, %v77, 0
  %vm279 = vcmask 1042432
  %v281 = vsel %vm279, %v81, 0
  %283 = vmatpush.msra.mxu0 0.0
  %284 = vmatpush.msra.mxu0 0.0
  %285 = vmatpush.msra.mxu0 0.0
  %286 = vmatpush.msra.mxu0 0.0
  %287 = vmatpush.msra.mxu0 0.0
  %288 = vmatpush.msra.mxu0 0.0
  %289 = vmatpush.msra.mxu0 0.0
  %290 = vmatpush.msra.mxu0 0.0
  %291 = vmatpush.msra.mxu0 0.0
  %292 = vmatpush.msra.mxu0 0.0
  %293 = vmatpush.msra.mxu0 0.0
  %294 = vmatpush.msra.mxu0 0.0
  %295 = vmatpush.msra.mxu0 %v281
  %296 = vmatpush.msra.mxu0 %v80
  %297 = vmatpush.msra.mxu0 %v79
  %298 = vmatpush.msra.mxu0 %v78
  %299 = vmatmul.f32.gmra.mxu0 %v88
  %v300 = vpop.f32.mrf.mxu0
  %v301 = vadd.f32 %v84, %v300
  %302 = vmatmul.f32.gmra.mxu0 %v91
  %v303 = vpop.f32.mrf.mxu0
  %v304 = vadd.f32 %v84, %v303
  %305 = vmatmul.f32.gmra.mxu0 %v94
  %v306 = vpop.f32.mrf.mxu0
  %v307 = vadd.f32 %v84, %v306
  %308 = vmatmul.f32.gmra.mxu0 %v97
  %v309 = vpop.f32.mrf.mxu0
  %v310 = vadd.f32 %v84, %v309
  %311 = vmatmul.f32.gmra.mxu0 %v100
  %v312 = vpop.f32.mrf.mxu0
  %v313 = vadd.f32 %v84, %v312
  %314 = vmatmul.f32.gmra.mxu0 %v103
  %v315 = vpop.f32.mrf.mxu0
  %v316 = vadd.f32 %v84, %v315
  %317 = vmatmul.f32.gmra.mxu0 %v106
  %v318 = vpop.f32.mrf.mxu0
  %v319 = vadd.f32 %v84, %v318
  %320 = vmatmul.f32.gmra.mxu0 %v109
  %v321 = vpop.f32.mrf.mxu0
  %v322 = vadd.f32 %v84, %v321
  %323 = vmatmul.f32.gmra.mxu0 %v112
  %v324 = vpop.f32.mrf.mxu0
  %v325 = vadd.f32 %v84, %v324
  %326 = vmatmul.f32.gmra.mxu0 %v115
  %v327 = vpop.f32.mrf.mxu0
  %v328 = vadd.f32 %v84, %v327
  %329 = vmatmul.f32.gmra.mxu0 %v118
  %v330 = vpop.f32.mrf.mxu0
  %v331 = vadd.f32 %v84, %v330
  %332 = vmatmul.f32.gmra.mxu0 %v121
  %v333 = vpop.f32.mrf.mxu0
  %v334 = vadd.f32 %v84, %v333
  %335 = vmatmul.f32.gmra.mxu0 %v124
  %v336 = vpop.f32.mrf.mxu0
  %v337 = vadd.f32 %v84, %v336
  %338 = vmatmul.f32.gmra.mxu0 %v127
  %v339 = vpop.f32.mrf.mxu0
  %v340 = vadd.f32 %v84, %v339
  %341 = vmatmul.f32.gmra.mxu0 %v130
  %v342 = vpop.f32.mrf.mxu0
  %v343 = vadd.f32 %v84, %v342
  %344 = vmatmul.f32.gmra.mxu0 %v133
  %v345 = vpop.f32.mrf.mxu0
  %v346 = vadd.f32 %v84, %v345
  %347 = vmatmul.f32.gmra.mxu0 %v136
  %v348 = vpop.f32.mrf.mxu0
  %v349 = vadd.f32 %v84, %v348
  %350 = vmatmul.f32.gmra.mxu0 %v139
  %v351 = vpop.f32.mrf.mxu0
  %v352 = vadd.f32 %v84, %v351
  %353 = vmatmul.f32.gmra.mxu0 %v142
  %v354 = vpop.f32.mrf.mxu0
  %v355 = vadd.f32 %v84, %v354
  %356 = vmatmul.f32.gmra.mxu0 %v145
  %v357 = vpop.f32.mrf.mxu0
  %v358 = vadd.f32 %v84, %v357
  %359 = vmatmul.f32.gmra.mxu0 %v148
  %v360 = vpop.f32.mrf.mxu0
  %v361 = vadd.f32 %v84, %v360
  %362 = vmatmul.f32.gmra.mxu0 %v151
  %v363 = vpop.f32.mrf.mxu0
  %v364 = vadd.f32 %v84, %v363
  %365 = vmatmul.f32.gmra.mxu0 %v154
  %v366 = vpop.f32.mrf.mxu0
  %v367 = vadd.f32 %v84, %v366
  %368 = vmatmul.f32.gmra.mxu0 %v157
  %v369 = vpop.f32.mrf.mxu0
  %v370 = vadd.f32 %v84, %v369
  %371 = vmatmul.f32.gmra.mxu0 %v160
  %v372 = vpop.f32.mrf.mxu0
  %v373 = vadd.f32 %v84, %v372
  %374 = vmatmul.f32.gmra.mxu0 %v163
  %v375 = vpop.f32.mrf.mxu0
  %v376 = vadd.f32 %v84, %v375
  %377 = vmatmul.f32.gmra.mxu0 %v166
  %v378 = vpop.f32.mrf.mxu0
  %v379 = vadd.f32 %v84, %v378
  %380 = vmatmul.f32.gmra.mxu0 %v169
  %v381 = vpop.f32.mrf.mxu0
  %v382 = vadd.f32 %v84, %v381
  %383 = vmatmul.f32.gmra.mxu0 %v172
  %v384 = vpop.f32.mrf.mxu0
  %v385 = vadd.f32 %v84, %v384
  %386 = vmatmul.f32.gmra.mxu0 %v175
  %v387 = vpop.f32.mrf.mxu0
  %v388 = vadd.f32 %v84, %v387
  %389 = vmatmul.f32.gmra.mxu0 %v178
  %v390 = vpop.f32.mrf.mxu0
  %v391 = vadd.f32 %v84, %v390
  %392 = vmatmul.f32.gmra.mxu0 %v181
  %v393 = vpop.f32.mrf.mxu0
  %v394 = vadd.f32 %v84, %v393
  %395 = vmatmul.f32.gmra.mxu0 %v184
  %v396 = vpop.f32.mrf.mxu0
  %v397 = vadd.f32 %v84, %v396
  %398 = vmatmul.f32.gmra.mxu0 %v187
  %v399 = vpop.f32.mrf.mxu0
  %v400 = vadd.f32 %v84, %v399
  %401 = vmatmul.f32.gmra.mxu0 %v190
  %v402 = vpop.f32.mrf.mxu0
  %v403 = vadd.f32 %v84, %v402
  %404 = vmatmul.f32.gmra.mxu0 %v193
  %v405 = vpop.f32.mrf.mxu0
  %v406 = vadd.f32 %v84, %v405
  %407 = vmatmul.f32.gmra.mxu0 %v196
  %v408 = vpop.f32.mrf.mxu0
  %v409 = vadd.f32 %v84, %v408
  %410 = vmatmul.f32.gmra.mxu0 %v199
  %v411 = vpop.f32.mrf.mxu0
  %v412 = vadd.f32 %v84, %v411
  %413 = vmatmul.f32.gmra.mxu0 %v202
  %v414 = vpop.f32.mrf.mxu0
  %v415 = vadd.f32 %v84, %v414
  %416 = vmatmul.f32.gmra.mxu0 %v205
  %v417 = vpop.f32.mrf.mxu0
  %v418 = vadd.f32 %v84, %v417
  %419 = vmatmul.f32.gmra.mxu0 %v208
  %v420 = vpop.f32.mrf.mxu0
  %v421 = vadd.f32 %v84, %v420
  %422 = vmatmul.f32.gmra.mxu0 %v211
  %v423 = vpop.f32.mrf.mxu0
  %v424 = vadd.f32 %v84, %v423
  %425 = vmatmul.f32.gmra.mxu0 %v214
  %v426 = vpop.f32.mrf.mxu0
  %v427 = vadd.f32 %v84, %v426
  %428 = vmatmul.f32.gmra.mxu0 %v217
  %v429 = vpop.f32.mrf.mxu0
  %v430 = vadd.f32 %v84, %v429
  %431 = vmatmul.f32.gmra.mxu0 %v220
  %v432 = vpop.f32.mrf.mxu0
  %v433 = vadd.f32 %v84, %v432
  %434 = vmatmul.f32.gmra.mxu0 %v223
  %v435 = vpop.f32.mrf.mxu0
  %v436 = vadd.f32 %v84, %v435
  %437 = vmatmul.f32.gmra.mxu0 %v226
  %v438 = vpop.f32.mrf.mxu0
  %v439 = vadd.f32 %v84, %v438
  %440 = vmatmul.f32.gmra.mxu0 %v229
  %v441 = vpop.f32.mrf.mxu0
  %v442 = vadd.f32 %v84, %v441
  %443 = vmatmul.f32.gmra.mxu0 %v232
  %v444 = vpop.f32.mrf.mxu0
  %v445 = vadd.f32 %v84, %v444
  %446 = vmatmul.f32.gmra.mxu0 %v235
  %v447 = vpop.f32.mrf.mxu0
  %v448 = vadd.f32 %v84, %v447
  %449 = vmatmul.f32.gmra.mxu0 %v238
  %v450 = vpop.f32.mrf.mxu0
  %v451 = vadd.f32 %v84, %v450
  %452 = vmatmul.f32.gmra.mxu0 %v241
  %v453 = vpop.f32.mrf.mxu0
  %v454 = vadd.f32 %v84, %v453
  %455 = vmatmul.f32.gmra.mxu0 %v244
  %v456 = vpop.f32.mrf.mxu0
  %v457 = vadd.f32 %v84, %v456
  %458 = vmatmul.f32.gmra.mxu0 %v247
  %v459 = vpop.f32.mrf.mxu0
  %v460 = vadd.f32 %v84, %v459
  %461 = vmatmul.f32.gmra.mxu0 %v250
  %v462 = vpop.f32.mrf.mxu0
  %v463 = vadd.f32 %v84, %v462
  %464 = vmatmul.f32.gmra.mxu0 %v253
  %v465 = vpop.f32.mrf.mxu0
  %v466 = vadd.f32 %v84, %v465
  %467 = vmatmul.f32.gmra.mxu0 %v256
  %v468 = vpop.f32.mrf.mxu0
  %v469 = vadd.f32 %v84, %v468
  %470 = vmatmul.f32.gmra.mxu0 %v259
  %v471 = vpop.f32.mrf.mxu0
  %v472 = vadd.f32 %v84, %v471
  %473 = vmatmul.f32.gmra.mxu0 %v262
  %v474 = vpop.f32.mrf.mxu0
  %v475 = vadd.f32 %v84, %v474
  %476 = vmatmul.f32.gmra.mxu0 %v265
  %v477 = vpop.f32.mrf.mxu0
  %v478 = vadd.f32 %v84, %v477
  %479 = vmatmul.f32.gmra.mxu0 %v268
  %v480 = vpop.f32.mrf.mxu0
  %v481 = vadd.f32 %v84, %v480
  %482 = vmatmul.f32.gmra.mxu0 %v271
  %v483 = vpop.f32.mrf.mxu0
  %v484 = vadd.f32 %v84, %v483
  %485 = vmatmul.f32.gmra.mxu0 %v274
  %v486 = vpop.f32.mrf.mxu0
  %v487 = vadd.f32 %v84, %v486
  %488 = vmatmul.f32.gmra.mxu0 %v277
  %v489 = vpop.f32.mrf.mxu0
  %v490 = vadd.f32 %v84, %v489
  %491 = vdwg.mxu0
  %v492 = vmax.f32 %v301, 0.0
  %v493 = vmax.f32 %v304, 0.0
  %v494 = vmax.f32 %v307, 0.0
  %v495 = vmax.f32 %v310, 0.0
  %v496 = vmax.f32 %v313, 0.0
  %v497 = vmax.f32 %v316, 0.0
  %v498 = vmax.f32 %v319, 0.0
  %v499 = vmax.f32 %v322, 0.0
  %v500 = vmax.f32 %v325, 0.0
  %v501 = vmax.f32 %v328, 0.0
  %v502 = vmax.f32 %v331, 0.0
  %v503 = vmax.f32 %v334, 0.0
  %v504 = vmax.f32 %v337, 0.0
  %v505 = vmax.f32 %v340, 0.0
  %v506 = vmax.f32 %v343, 0.0
  %v507 = vmax.f32 %v346, 0.0
  %v508 = vmax.f32 %v349, 0.0
  %v509 = vmax.f32 %v352, 0.0
  %v510 = vmax.f32 %v355, 0.0
  %v511 = vmax.f32 %v358, 0.0
  %v512 = vmax.f32 %v361, 0.0
  %v513 = vmax.f32 %v364, 0.0
  %v514 = vmax.f32 %v367, 0.0
  %v515 = vmax.f32 %v370, 0.0
  %v516 = vmax.f32 %v373, 0.0
  %v517 = vmax.f32 %v376, 0.0
  %v518 = vmax.f32 %v379, 0.0
  %v519 = vmax.f32 %v382, 0.0
  %v520 = vmax.f32 %v385, 0.0
  %v521 = vmax.f32 %v388, 0.0
  %v522 = vmax.f32 %v391, 0.0
  %v523 = vmax.f32 %v394, 0.0
  %v524 = vmax.f32 %v397, 0.0
  %v525 = vmax.f32 %v400, 0.0
  %v526 = vmax.f32 %v403, 0.0
  %v527 = vmax.f32 %v406, 0.0
  %v528 = vmax.f32 %v409, 0.0
  %v529 = vmax.f32 %v412, 0.0
  %v530 = vmax.f32 %v415, 0.0
  %v531 = vmax.f32 %v418, 0.0
  %v532 = vmax.f32 %v421, 0.0
  %v533 = vmax.f32 %v424, 0.0
  %v534 = vmax.f32 %v427, 0.0
  %v535 = vmax.f32 %v430, 0.0
  %v536 = vmax.f32 %v433, 0.0
  %v537 = vmax.f32 %v436, 0.0
  %v538 = vmax.f32 %v439, 0.0
  %v539 = vmax.f32 %v442, 0.0
  %v540 = vmax.f32 %v445, 0.0
  %v541 = vmax.f32 %v448, 0.0
  %v542 = vmax.f32 %v451, 0.0
  %v543 = vmax.f32 %v454, 0.0
  %v544 = vmax.f32 %v457, 0.0
  %v545 = vmax.f32 %v460, 0.0
  %v546 = vmax.f32 %v463, 0.0
  %v547 = vmax.f32 %v466, 0.0
  %v548 = vmax.f32 %v469, 0.0
  %v549 = vmax.f32 %v472, 0.0
  %v550 = vmax.f32 %v475, 0.0
  %v551 = vmax.f32 %v478, 0.0
  %v552 = vmax.f32 %v481, 0.0
  %v553 = vmax.f32 %v484, 0.0
  %v554 = vmax.f32 %v487, 0.0
  %v555 = vmax.f32 %v490, 0.0
  %vm556 = vcmask 261120
  %557 = vst.msk [vmem:[%s3] sm:$0xff] %vm556, %v492
  %558 = vst.msk [vmem:[%s3 + $0x8] sm:$0xff] %vm556, %v493
  %559 = vst.msk [vmem:[%s3 + $0x10] sm:$0xff] %vm556, %v494
  %560 = vst.msk [vmem:[%s3 + $0x18] sm:$0xff] %vm556, %v495
  %561 = vst.msk [vmem:[%s3 + $0x20] sm:$0xff] %vm556, %v496
  %562 = vst.msk [vmem:[%s3 + $0x28] sm:$0xff] %vm556, %v497
  %563 = vst.msk [vmem:[%s3 + $0x30] sm:$0xff] %vm556, %v498
  %564 = vst.msk [vmem:[%s3 + $0x38] sm:$0xff] %vm556, %v499
  %565 = vst.msk [vmem:[%s3 + $0x40] sm:$0xff] %vm556, %v500
  %566 = vst.msk [vmem:[%s3 + $0x48] sm:$0xff] %vm556, %v501
  %567 = vst.msk [vmem:[%s3 + $0x50] sm:$0xff] %vm556, %v502
  %568 = vst.msk [vmem:[%s3 + $0x58] sm:$0xff] %vm556, %v503
  %569 = vst.msk [vmem:[%s3 + $0x60] sm:$0xff] %vm556, %v504
  %570 = vst.msk [vmem:[%s3 + $0x68] sm:$0xff] %vm556, %v505
  %571 = vst.msk [vmem:[%s3 + $0x70] sm:$0xff] %vm556, %v506
  %572 = vst.msk [vmem:[%s3 + $0x78] sm:$0xff] %vm556, %v507
  %573 = vst.msk [vmem:[%s3 + $0x80] sm:$0xff] %vm556, %v508
  %574 = vst.msk [vmem:[%s3 + $0x88] sm:$0xff] %vm556, %v509
  %575 = vst.msk [vmem:[%s3 + $0x90] sm:$0xff] %vm556, %v510
  %576 = vst.msk [vmem:[%s3 + $0x98] sm:$0xff] %vm556, %v511
  %577 = vst.msk [vmem:[%s3 + $0xa0] sm:$0xff] %vm556, %v512
  %578 = vst.msk [vmem:[%s3 + $0xa8] sm:$0xff] %vm556, %v513
  %579 = vst.msk [vmem:[%s3 + $0xb0] sm:$0xff] %vm556, %v514
  %580 = vst.msk [vmem:[%s3 + $0xb8] sm:$0xff] %vm556, %v515
  %581 = vst.msk [vmem:[%s3 + $0xc0] sm:$0xff] %vm556, %v516
  %582 = vst.msk [vmem:[%s3 + $0xc8] sm:$0xff] %vm556, %v517
  %583 = vst.msk [vmem:[%s3 + $0xd0] sm:$0xff] %vm556, %v518
  %584 = vst.msk [vmem:[%s3 + $0xd8] sm:$0xff] %vm556, %v519
  %585 = vst.msk [vmem:[%s3 + $0xe0] sm:$0xff] %vm556, %v520
  %586 = vst.msk [vmem:[%s3 + $0xe8] sm:$0xff] %vm556, %v521
  %587 = vst.msk [vmem:[%s3 + $0xf0] sm:$0xff] %vm556, %v522
  %588 = vst.msk [vmem:[%s3 + $0xf8] sm:$0xff] %vm556, %v523
  %589 = vst.msk [vmem:[%s3 + $0x100] sm:$0xff] %vm556, %v524
  %590 = vst.msk [vmem:[%s3 + $0x108] sm:$0xff] %vm556, %v525
  %591 = vst.msk [vmem:[%s3 + $0x110] sm:$0xff] %vm556, %v526
  %592 = vst.msk [vmem:[%s3 + $0x118] sm:$0xff] %vm556, %v527
  %593 = vst.msk [vmem:[%s3 + $0x120] sm:$0xff] %vm556, %v528
  %594 = vst.msk [vmem:[%s3 + $0x128] sm:$0xff] %vm556, %v529
  %595 = vst.msk [vmem:[%s3 + $0x130] sm:$0xff] %vm556, %v530
  %596 = vst.msk [vmem:[%s3 + $0x138] sm:$0xff] %vm556, %v531
  %597 = vst.msk [vmem:[%s3 + $0x140] sm:$0xff] %vm556, %v532
  %598 = vst.msk [vmem:[%s3 + $0x148] sm:$0xff] %vm556, %v533
  %599 = vst.msk [vmem:[%s3 + $0x150] sm:$0xff] %vm556, %v534
  %600 = vst.msk [vmem:[%s3 + $0x158] sm:$0xff] %vm556, %v535
  %601 = vst.msk [vmem:[%s3 + $0x160] sm:$0xff] %vm556, %v536
  %602 = vst.msk [vmem:[%s3 + $0x168] sm:$0xff] %vm556, %v537
  %603 = vst.msk [vmem:[%s3 + $0x170] sm:$0xff] %vm556, %v538
  %604 = vst.msk [vmem:[%s3 + $0x178] sm:$0xff] %vm556, %v539
  %605 = vst.msk [vmem:[%s3 + $0x180] sm:$0xff] %vm556, %v540
  %606 = vst.msk [vmem:[%s3 + $0x188] sm:$0xff] %vm556, %v541
  %607 = vst.msk [vmem:[%s3 + $0x190] sm:$0xff] %vm556, %v542
  %608 = vst.msk [vmem:[%s3 + $0x198] sm:$0xff] %vm556, %v543
  %609 = vst.msk [vmem:[%s3 + $0x1a0] sm:$0xff] %vm556, %v544
  %610 = vst.msk [vmem:[%s3 + $0x1a8] sm:$0xff] %vm556, %v545
  %611 = vst.msk [vmem:[%s3 + $0x1b0] sm:$0xff] %vm556, %v546
  %612 = vst.msk [vmem:[%s3 + $0x1b8] sm:$0xff] %vm556, %v547
  %613 = vst.msk [vmem:[%s3 + $0x1c0] sm:$0xff] %vm556, %v548
  %614 = vst.msk [vmem:[%s3 + $0x1c8] sm:$0xff] %vm556, %v549
  %615 = vst.msk [vmem:[%s3 + $0x1d0] sm:$0xff] %vm556, %v550
  %616 = vst.msk [vmem:[%s3 + $0x1d8] sm:$0xff] %vm556, %v551
  %617 = vst.msk [vmem:[%s3 + $0x1e0] sm:$0xff] %vm556, %v552
  %618 = vst.msk [vmem:[%s3 + $0x1e8] sm:$0xff] %vm556, %v553
  %619 = vst.msk [vmem:[%s3 + $0x1f0] sm:$0xff] %vm556, %v554
  %620 = vst.msk [vmem:[%s3 + $0x1f8] sm:$0xff] %vm556, %v555
  // Predicated region
  $region14: #{tpu_custom_call.1} parent=0 // pred_check
    _
  $region15: #{tpu_custom_call.1} parent=0 // pred_check_branch
    %622 = sbr.rel (0) target = $region17
  $region16: #{tpu_custom_call.1} parent=0 // pred_region
    _
  $region17: #{tpu_custom_call.1} parent=0 // pred_fallthru
    _
  // Predicated region
  $region18: #{tpu_custom_call.1} parent=0 // pred_check
    _
  $region19: #{tpu_custom_call.1} parent=0 // pred_check_branch
    %624 = sbr.rel (0) target = $region21
  $region20: #{tpu_custom_call.1} parent=0 // pred_region
    _
  $region21: #{tpu_custom_call.1} parent=0 // pred_fallthru
    _

</llo_original>
